<compile_context>
chip_gen: v5e
topology: v5e:2x2
jax: 0.10.0
libtpu: 0.0.40
codegen_flags: <defaults>
</compile_context>

<pallas_src>
import functools

import numpy as np

import jax
import jax.numpy as jnp
from jax.experimental import pallas as pl
from jax.experimental.pallas import tpu as pltpu


# Below this input-channel count the 1x1 conv is done as an unrolled VPU broadcast-FMA
# instead of a (heavily padded) MXU matmul.
_VPU_CONV1X1_MAX_CIN = 8


# ----------------------------------------------------------------------------
# Fused kernel
# ----------------------------------------------------------------------------

def _ghost_attention_kernel(x_ref, pool_ref, up_ref, colidx_ref, rowidx_ref,
                            w1_ref, b1_ref, w2_ref, b2_ref, w3_ref, b3_ref,
                            o_ref, *, K, dilation, Hp, Wp):
    Nb = x_ref.shape[0]
    C = x_ref.shape[1]
    Cout = w1_ref.shape[0]
    P = Hp * Wp                      # compact pooled length (lane axis)
    pt = (K - 1) // 2                # taps on each side of the centre tap

    # Loop-invariant loads (hoisted out of the batch loop).
    w1 = w1_ref[...]                 # (Cout, C)   BN1-folded 1x1 conv weight
    b1 = b1_ref[...]                 # (Cout, 1)
    w2 = w2_ref[...]                 # (Cout, K)   BN2-folded (1,K) depthwise weight
    b2 = b2_ref[...]
    w3 = w3_ref[...]                 # (Cout, K)   BN3-folded (K,1) depthwise weight
    b3 = b3_ref[...]
    pool_m = pool_ref[...]           # (HW, P)  0.25-valued one-hot: AvgPool2x2 + compaction
    up_m = up_ref[...]               # (P, HW)  one-hot: nearest-neighbour x2 upsample
    col_p = colidx_ref[...]          # (1, P) int32 pooled-column index of each lane
    row_p = rowidx_ref[...]          # (1, P) int32 pooled-row index of each lane

    # Per-tap validity masks, precomputed ONCE outside the unrolled tap loops (item 9).
    col_ok = {}
    row_ok = {}
    for t in range(K):
        dt = (t - pt) * dilation
        if dt != 0:
            col_ok[t] = (col_p + dt >= 0) & (col_p + dt <= Wp - 1)
            row_ok[t] = (row_p + dt >= 0) & (row_p + dt <= Hp - 1)

    def shifted(v, off):
        # value at compact position p + off (circular roll on the XLU; callers mask
        # the wrapped/out-of-range lanes to implement zero padding).
        return pltpu.roll(v, shift=(-off) % P, axis=1)

    def body(b, carry):
        x_s = x_ref[b]               # (C, HW) f32, lane-dense

        # ---- AvgPool2d(2,2) + compaction: one MXU matmul (dense (C, P) result) ------
        pooled = jnp.dot(x_s, pool_m, preferred_element_type=jnp.float32)   # (C, P)

        # ---- 1x1 conv (bias-free) with BN1 folded ------------------------------------
        if C <= _VPU_CONV1X1_MAX_CIN:
            # tiny channel count: unrolled VPU broadcast-FMA (item 10)
            z = b1 + w1[:, 0:1] * pooled[0:1, :]
            for ci in range(1, C):
                z = z + w1[:, ci:ci + 1] * pooled[ci:ci + 1, :]
        else:
            # production widths: bf16 operands on the MXU, f32 accumulate (item 7)
            z = jnp.dot(w1.astype(jnp.bfloat16), pooled.astype(jnp.bfloat16),
                        preferred_element_type=jnp.float32) + b1

        # ---- depthwise (1, K) dilated conv + folded BN2 (column-mask zero padding) ---
        acc = w2[:, pt:pt + 1] * z                      # centre tap: no roll, no mask
        for t in range(K):
            dt = (t - pt) * dilation
            if dt == 0:
                continue
            acc = acc + w2[:, t:t + 1] * jnp.where(col_ok[t], shifted(z, dt), 0.0)
        att = acc + b2

        # ---- depthwise (K, 1) dilated conv + folded BN3 (row-mask zero padding) ------
        acc = w3[:, pt:pt + 1] * att
        for t in range(K):
            dt = (t - pt) * dilation
            if dt == 0:
                continue
            acc = acc + w3[:, t:t + 1] * jnp.where(row_ok[t], shifted(att, dt * Wp), 0.0)
        att = acc + b3

        # ---- Sigmoid as 0.5*(tanh(y/2)+1): one EUP op per *pooled* element -----------
        gate = 0.5 * (jnp.tanh(0.5 * att) + 1.0)        # (Cout, P)

        # ---- Nearest-neighbour x2 upsample (one-hot matmul) + final gating -----------
        g_full = jnp.dot(gate, up_m, preferred_element_type=jnp.float32)    # (Cout, HW)
        o_ref[b] = x_s * g_full
        return carry

    jax.lax.fori_loop(0, Nb, body, 0)


# ----------------------------------------------------------------------------
# Wrapper (trace-time BatchNorm folding + constant matrices + pallas_call plumbing)
# ----------------------------------------------------------------------------

def _fold_batchnorm(conv_w, bn, eps=1e-5):
    """Fold an eval-mode BatchNorm2d following a bias-free conv into (w', b')."""
    s = bn["gamma"] / jnp.sqrt(bn["var"] + eps)
    return conv_w * s[:, None], (bn["beta"] - bn["mean"] * s)[:, None]


def _pool_and_upsample_matrices(H, W):
    """One-hot matrices for AvgPool2x2+compaction and nearest-x2 upsample (numpy, host)."""
    Hp, Wp = H // 2, W // 2
    HW, P = H * W, Hp * Wp
    f = np.arange(HW)
    r, c = f // W, f % W
    cell = (r // 2) * Wp + (c // 2)                  # pooled cell owning each full-res pos
    pool = np.zeros((HW, P), np.float32)
    pool[f, cell] = 0.25                             # x @ pool == compact AvgPool2d(2,2)
    up = np.zeros((P, HW), np.float32)
    up[cell, f] = 1.0                                # gate @ up == nearest-neighbour x2
    col_idx = (np.arange(P) % Wp).astype(np.int32)[None, :]
    row_idx = (np.arange(P) // Wp).astype(np.int32)[None, :]
    return pool, up, col_idx, row_idx


def _pick_batch_tile(N, per_sample_bytes, target_bytes=2 << 20):
    """Largest divisor of N whose block stays under ~target bytes, preferring >=2 grid
    steps so both v7x TensorCores are used (items 4 & 6)."""
    divisors = [d for d in range(1, N + 1) if N % d == 0]
    cands = [d for d in divisors if N // d >= 2] or divisors
    fitting = [d for d in cands if d * per_sample_bytes <= target_bytes]
    return max(fitting) if fitting else min(cands)


def ghost_attention(x, params, *, kernel_size=5, dilation=1):
    """x: (N, C, H, W) float32 NCHW; returns x * attention(x) with the same shape."""
    N, C, H, W = x.shape
    assert H % 2 == 0 and W % 2 == 0, "GhostAttention needs even spatial dims"
    K = kernel_size
    assert K % 2 == 1, "centre-tap accumulator init assumes odd kernel_size"

    # Fold the three eval-mode BatchNorms into the convs at trace time (tiny jnp ops).
    w1f, b1f = _fold_batchnorm(params["w1"], params["bn1"])   # (Cout, Cin), (Cout, 1)
    w2f, b2f = _fold_batchnorm(params["w2"], params["bn2"])   # (Cout, K),  (Cout, 1)
    w3f, b3f = _fold_batchnorm(params["w3"], params["bn3"])   # (Cout, K),  (Cout, 1)
    Cout = w1f.shape[0]
    assert Cout == C, "forward multiplies x * attention(x); requires out_ch == in_ch"

    Hp, Wp = H // 2, W // 2
    HW, P = H * W, Hp * Wp
    pool_m, up_m, col_idx, row_idx = _pool_and_upsample_matrices(H, W)

    per_sample_bytes = 2 * C * HW * 4                         # x block + gated output block
    Nb = _pick_batch_tile(N, per_sample_bytes)
    grid = (N // Nb,)

    kern = functools.partial(_ghost_attention_kernel, K=K, dilation=dilation, Hp=Hp, Wp=Wp)

    flops = int(N * (2 * C * HW * P            # pool/compaction matmul
                     + 2 * C * Cout * P        # 1x1 conv
                     + 4 * K * Cout * P        # two depthwise convs
                     + 2 * Cout * P * HW       # upsample matmul
                     + 2 * Cout * HW))         # final gating
    bytes_accessed = int(4 * (2 * N * C * HW + 2 * HW * P + Cout * (C + 2 * K + 3) + 2 * P))

    out = pl.pallas_call(
        kern,
        out_shape=jax.ShapeDtypeStruct((N, Cout, HW), jnp.float32),
        grid=grid,
        in_specs=[
            pl.BlockSpec((Nb, C, HW), lambda g: (g, 0, 0)),       # x (lane-dense)
            pl.BlockSpec((HW, P), lambda g: (0, 0)),              # pool/compaction matrix
            pl.BlockSpec((P, HW), lambda g: (0, 0)),              # upsample matrix
            pl.BlockSpec((1, P), lambda g: (0, 0)),               # pooled column indices
            pl.BlockSpec((1, P), lambda g: (0, 0)),               # pooled row indices
            pl.BlockSpec((Cout, C), lambda g: (0, 0)),
            pl.BlockSpec((Cout, 1), lambda g: (0, 0)),
            pl.BlockSpec((Cout, K), lambda g: (0, 0)),
            pl.BlockSpec((Cout, 1), lambda g: (0, 0)),
            pl.BlockSpec((Cout, K), lambda g: (0, 0)),
            pl.BlockSpec((Cout, 1), lambda g: (0, 0)),
        ],
        out_specs=pl.BlockSpec((Nb, Cout, HW), lambda g: (g, 0, 0)),
        compiler_params=pltpu.CompilerParams(
            dimension_semantics=("parallel",),
            vmem_limit_bytes=32 * 1024 * 1024,
        ),
        cost_estimate=pl.CostEstimate(
            flops=flops,
            transcendentals=int(N * Cout * P),
            bytes_accessed=bytes_accessed,
        ),
    )(x.reshape(N, C, HW), jnp.asarray(pool_m), jnp.asarray(up_m),
      jnp.asarray(col_idx), jnp.asarray(row_idx), w1f, b1f, w2f, b2f, w3f, b3f)
    return out.reshape(N, Cout, H, W)


# ----------------------------------------------------------------------------
# Deterministic synthetic parameters (PyTorch-shaped, squeezed)
# ----------------------------------------------------------------------------

def make_ghost_attention_params(key, in_ch, out_ch, kernel_size=5):
    ks = jax.random.split(key, 6)

    def normal(k, shape, scale=0.5):
        return scale * jax.random.normal(k, shape, jnp.float32)

    def batchnorm(k, ch):
        k1, k2, k3, k4 = jax.random.split(k, 4)
        return {
            "gamma": 1.0 + 0.1 * jax.random.normal(k1, (ch,), jnp.float32),
            "beta": 0.1 * jax.random.normal(k2, (ch,), jnp.float32),
            "mean": 0.1 * jax.random.normal(k3, (ch,), jnp.float32),
            "var": jax.random.uniform(k4, (ch,), jnp.float32, minval=0.5, maxval=1.5),
        }

    return {
        "w1": normal(ks[0], (out_ch, in_ch)),            # Conv2d(in, out, 1, bias=False)
        "bn1": batchnorm(ks[1], out_ch),
        "w2": normal(ks[2], (out_ch, kernel_size)),      # Conv2d (1, K), groups=out
        "bn2": batchnorm(ks[3], out_ch),
        "w3": normal(ks[4], (out_ch, kernel_size)),      # Conv2d (K, 1), groups=out
        "bn3": batchnorm(ks[5], out_ch),
    }


# ----------------------------------------------------------------------------
# Pure-jnp reference (same math, straightforward NCHW implementation)
# ----------------------------------------------------------------------------

def ghost_attention_reference(x, p, *, kernel_size=5, dilation=1, eps=1e-5):
    N, C, H, W = x.shape
    Hp, Wp = H // 2, W // 2
    K = kernel_size
    pad = dilation * (K - 1) // 2

    def bn(y, b):
        s = b["gamma"] / jnp.sqrt(b["var"] + eps)
        return y * s[None, :, None, None] + (b["beta"] - b["mean"] * s)[None, :, None, None]

    y = x.reshape(N, C, Hp, 2, Wp, 2).mean(axis=(3, 5))                  # AvgPool2d(2, 2)
    y = jnp.sum(y[:, None] * p["w1"][None, :, :, None, None], axis=2)    # 1x1 conv
    y = bn(y, p["bn1"])
    yp = jnp.pad(y, ((0, 0), (0, 0), (0, 0), (pad, pad)))                # (1, K) depthwise
    y = sum(p["w2"][None, :, t, None, None] * yp[:, :, :, t * dilation:t * dilation + Wp]
            for t in range(K))
    y = bn(y, p["bn2"])
    yp = jnp.pad(y, ((0, 0), (0, 0), (pad, pad), (0, 0)))                # (K, 1) depthwise
    y = sum(p["w3"][None, :, t, None, None] * yp[:, :, t * dilation:t * dilation + Hp, :]
            for t in range(K))
    y = bn(y, p["bn3"])
    g = jax.nn.sigmoid(y)
    g = jnp.repeat(jnp.repeat(g, 2, axis=2), 2, axis=3)                  # nearest x2 upsample
    return x * g


# ----------------------------------------------------------------------------

if __name__ == "__main__":
    key = jax.random.PRNGKey(0)
    kx, kp = jax.random.split(key)
    N, C, H, W = 2, 4, 16, 16
    x = jax.random.normal(kx, (N, C, H, W), jnp.float32)
    params = make_ghost_attention_params(kp, C, C, kernel_size=5)

    out = ghost_attention(x, params, kernel_size=5, dilation=1)
    out = jax.block_until_ready(out)
    assert out.shape == (N, C, H, W), out.shape
    assert bool(jnp.all(jnp.isfinite(out)))

    ref = ghost_attention_reference(x, params, kernel_size=5, dilation=1)
    err = float(jnp.max(jnp.abs(out - ref)))
    # Small slack: DEFAULT-precision MXU matmuls may run reduced-precision passes.
    assert err < 5e-2, f"kernel vs reference mismatch: max abs err = {err}"

    print("KERNEL_OK")
</pallas_src>

<mosaic_0001>
module attributes {stable_mosaic.version = 11 : i64} {
  func.func @_ghost_attention_kernel(%arg0: i32, %arg1: memref<1x4x256xf32, #tpu.memory_space<vmem>>, %arg2: memref<256x64xf32, #tpu.memory_space<vmem>>, %arg3: memref<64x256xf32, #tpu.memory_space<vmem>>, %arg4: memref<1x64xi32, #tpu.memory_space<vmem>>, %arg5: memref<1x64xi32, #tpu.memory_space<vmem>>, %arg6: memref<4x4xf32, #tpu.memory_space<vmem>>, %arg7: memref<4x1xf32, #tpu.memory_space<vmem>>, %arg8: memref<4x5xf32, #tpu.memory_space<vmem>>, %arg9: memref<4x1xf32, #tpu.memory_space<vmem>>, %arg10: memref<4x5xf32, #tpu.memory_space<vmem>>, %arg11: memref<4x1xf32, #tpu.memory_space<vmem>>, %arg12: memref<1x4x256xf32, #tpu.memory_space<vmem>>) attributes {dimension_semantics = [#tpu.dimension_semantics<parallel>], iteration_bounds = array<i64: 2>, scalar_prefetch = 0 : i64, scratch_operands = 0 : i64, tpu.core_type = #tpu.core_type<tc>, window_params = [{transform_indices = @transform_0, window_bounds = array<i64: 1, 4, 256>}, {pipeline_mode = #tpu.pipeline_mode<synchronous>, transform_indices = @transform_1, window_bounds = array<i64: 256, 64>}, {pipeline_mode = #tpu.pipeline_mode<synchronous>, transform_indices = @transform_2, window_bounds = array<i64: 64, 256>}, {pipeline_mode = #tpu.pipeline_mode<synchronous>, transform_indices = @transform_3, window_bounds = array<i64: 1, 64>}, {pipeline_mode = #tpu.pipeline_mode<synchronous>, transform_indices = @transform_4, window_bounds = array<i64: 1, 64>}, {pipeline_mode = #tpu.pipeline_mode<synchronous>, transform_indices = @transform_5, window_bounds = array<i64: 4, 4>}, {pipeline_mode = #tpu.pipeline_mode<synchronous>, transform_indices = @transform_6, window_bounds = array<i64: 4, 1>}, {pipeline_mode = #tpu.pipeline_mode<synchronous>, transform_indices = @transform_7, window_bounds = array<i64: 4, 5>}, {pipeline_mode = #tpu.pipeline_mode<synchronous>, transform_indices = @transform_8, window_bounds = array<i64: 4, 1>}, {pipeline_mode = #tpu.pipeline_mode<synchronous>, transform_indices = @transform_9, window_bounds = array<i64: 4, 5>}, {pipeline_mode = #tpu.pipeline_mode<synchronous>, transform_indices = @transform_10, window_bounds = array<i64: 4, 1>}, {transform_indices = @transform_11, window_bounds = array<i64: 1, 4, 256>}]} {
    %c0 = arith.constant 0 : index
    %c0_0 = arith.constant 0 : index
    %0 = vector.load %arg6[%c0, %c0_0] : memref<4x4xf32, #tpu.memory_space<vmem>>, vector<4x4xf32>
    %c0_1 = arith.constant 0 : index
    %c0_2 = arith.constant 0 : index
    %1 = vector.load %arg7[%c0_1, %c0_2] : memref<4x1xf32, #tpu.memory_space<vmem>>, vector<4x1xf32>
    %c0_3 = arith.constant 0 : index
    %c0_4 = arith.constant 0 : index
    %2 = vector.load %arg8[%c0_3, %c0_4] : memref<4x5xf32, #tpu.memory_space<vmem>>, vector<4x5xf32>
    %c0_5 = arith.constant 0 : index
    %c0_6 = arith.constant 0 : index
    %3 = vector.load %arg9[%c0_5, %c0_6] : memref<4x1xf32, #tpu.memory_space<vmem>>, vector<4x1xf32>
    %c0_7 = arith.constant 0 : index
    %c0_8 = arith.constant 0 : index
    %4 = vector.load %arg10[%c0_7, %c0_8] : memref<4x5xf32, #tpu.memory_space<vmem>>, vector<4x5xf32>
    %c0_9 = arith.constant 0 : index
    %c0_10 = arith.constant 0 : index
    %5 = vector.load %arg11[%c0_9, %c0_10] : memref<4x1xf32, #tpu.memory_space<vmem>>, vector<4x1xf32>
    %c0_11 = arith.constant 0 : index
    %c0_12 = arith.constant 0 : index
    %6 = vector.load %arg2[%c0_11, %c0_12] : memref<256x64xf32, #tpu.memory_space<vmem>>, vector<256x64xf32>
    %c0_13 = arith.constant 0 : index
    %c0_14 = arith.constant 0 : index
    %7 = vector.load %arg3[%c0_13, %c0_14] : memref<64x256xf32, #tpu.memory_space<vmem>>, vector<64x256xf32>
    %c0_15 = arith.constant 0 : index
    %c0_16 = arith.constant 0 : index
    %8 = vector.load %arg4[%c0_15, %c0_16] : memref<1x64xi32, #tpu.memory_space<vmem>>, vector<1x64xi32>
    %c0_17 = arith.constant 0 : index
    %c0_18 = arith.constant 0 : index
    %9 = vector.load %arg5[%c0_17, %c0_18] : memref<1x64xi32, #tpu.memory_space<vmem>>, vector<1x64xi32>
    %c-2_i32 = arith.constant -2 : i32
    %10 = vector.broadcast %c-2_i32 : i32 to vector<1x64xi32>
    %11 = arith.addi %8, %10 : vector<1x64xi32>
    %c0_i32 = arith.constant 0 : i32
    %12 = vector.broadcast %c0_i32 : i32 to vector<1x64xi32>
    %13 = arith.cmpi sge, %11, %12 : vector<1x64xi32>
    %c-2_i32_19 = arith.constant -2 : i32
    %14 = vector.broadcast %c-2_i32_19 : i32 to vector<1x64xi32>
    %15 = arith.addi %8, %14 : vector<1x64xi32>
    %c7_i32 = arith.constant 7 : i32
    %16 = vector.broadcast %c7_i32 : i32 to vector<1x64xi32>
    %17 = arith.cmpi sle, %15, %16 : vector<1x64xi32>
    %18 = arith.andi %13, %17 : vector<1x64xi1>
    %c-2_i32_20 = arith.constant -2 : i32
    %19 = vector.broadcast %c-2_i32_20 : i32 to vector<1x64xi32>
    %20 = arith.addi %9, %19 : vector<1x64xi32>
    %c0_i32_21 = arith.constant 0 : i32
    %21 = vector.broadcast %c0_i32_21 : i32 to vector<1x64xi32>
    %22 = arith.cmpi sge, %20, %21 : vector<1x64xi32>
    %c-2_i32_22 = arith.constant -2 : i32
    %23 = vector.broadcast %c-2_i32_22 : i32 to vector<1x64xi32>
    %24 = arith.addi %9, %23 : vector<1x64xi32>
    %c7_i32_23 = arith.constant 7 : i32
    %25 = vector.broadcast %c7_i32_23 : i32 to vector<1x64xi32>
    %26 = arith.cmpi sle, %24, %25 : vector<1x64xi32>
    %27 = arith.andi %22, %26 : vector<1x64xi1>
    %c-1_i32 = arith.constant -1 : i32
    %28 = vector.broadcast %c-1_i32 : i32 to vector<1x64xi32>
    %29 = arith.addi %8, %28 : vector<1x64xi32>
    %c0_i32_24 = arith.constant 0 : i32
    %30 = vector.broadcast %c0_i32_24 : i32 to vector<1x64xi32>
    %31 = arith.cmpi sge, %29, %30 : vector<1x64xi32>
    %c-1_i32_25 = arith.constant -1 : i32
    %32 = vector.broadcast %c-1_i32_25 : i32 to vector<1x64xi32>
    %33 = arith.addi %8, %32 : vector<1x64xi32>
    %c7_i32_26 = arith.constant 7 : i32
    %34 = vector.broadcast %c7_i32_26 : i32 to vector<1x64xi32>
    %35 = arith.cmpi sle, %33, %34 : vector<1x64xi32>
    %36 = arith.andi %31, %35 : vector<1x64xi1>
    %c-1_i32_27 = arith.constant -1 : i32
    %37 = vector.broadcast %c-1_i32_27 : i32 to vector<1x64xi32>
    %38 = arith.addi %9, %37 : vector<1x64xi32>
    %c0_i32_28 = arith.constant 0 : i32
    %39 = vector.broadcast %c0_i32_28 : i32 to vector<1x64xi32>
    %40 = arith.cmpi sge, %38, %39 : vector<1x64xi32>
    %c-1_i32_29 = arith.constant -1 : i32
    %41 = vector.broadcast %c-1_i32_29 : i32 to vector<1x64xi32>
    %42 = arith.addi %9, %41 : vector<1x64xi32>
    %c7_i32_30 = arith.constant 7 : i32
    %43 = vector.broadcast %c7_i32_30 : i32 to vector<1x64xi32>
    %44 = arith.cmpi sle, %42, %43 : vector<1x64xi32>
    %45 = arith.andi %40, %44 : vector<1x64xi1>
    %c1_i32 = arith.constant 1 : i32
    %46 = vector.broadcast %c1_i32 : i32 to vector<1x64xi32>
    %47 = arith.addi %8, %46 : vector<1x64xi32>
    %c0_i32_31 = arith.constant 0 : i32
    %48 = vector.broadcast %c0_i32_31 : i32 to vector<1x64xi32>
    %49 = arith.cmpi sge, %47, %48 : vector<1x64xi32>
    %c1_i32_32 = arith.constant 1 : i32
    %50 = vector.broadcast %c1_i32_32 : i32 to vector<1x64xi32>
    %51 = arith.addi %8, %50 : vector<1x64xi32>
    %c7_i32_33 = arith.constant 7 : i32
    %52 = vector.broadcast %c7_i32_33 : i32 to vector<1x64xi32>
    %53 = arith.cmpi sle, %51, %52 : vector<1x64xi32>
    %54 = arith.andi %49, %53 : vector<1x64xi1>
    %c1_i32_34 = arith.constant 1 : i32
    %55 = vector.broadcast %c1_i32_34 : i32 to vector<1x64xi32>
    %56 = arith.addi %9, %55 : vector<1x64xi32>
    %c0_i32_35 = arith.constant 0 : i32
    %57 = vector.broadcast %c0_i32_35 : i32 to vector<1x64xi32>
    %58 = arith.cmpi sge, %56, %57 : vector<1x64xi32>
    %c1_i32_36 = arith.constant 1 : i32
    %59 = vector.broadcast %c1_i32_36 : i32 to vector<1x64xi32>
    %60 = arith.addi %9, %59 : vector<1x64xi32>
    %c7_i32_37 = arith.constant 7 : i32
    %61 = vector.broadcast %c7_i32_37 : i32 to vector<1x64xi32>
    %62 = arith.cmpi sle, %60, %61 : vector<1x64xi32>
    %63 = arith.andi %58, %62 : vector<1x64xi1>
    %c2_i32 = arith.constant 2 : i32
    %64 = vector.broadcast %c2_i32 : i32 to vector<1x64xi32>
    %65 = arith.addi %8, %64 : vector<1x64xi32>
    %c0_i32_38 = arith.constant 0 : i32
    %66 = vector.broadcast %c0_i32_38 : i32 to vector<1x64xi32>
    %67 = arith.cmpi sge, %65, %66 : vector<1x64xi32>
    %c2_i32_39 = arith.constant 2 : i32
    %68 = vector.broadcast %c2_i32_39 : i32 to vector<1x64xi32>
    %69 = arith.addi %8, %68 : vector<1x64xi32>
    %c7_i32_40 = arith.constant 7 : i32
    %70 = vector.broadcast %c7_i32_40 : i32 to vector<1x64xi32>
    %71 = arith.cmpi sle, %69, %70 : vector<1x64xi32>
    %72 = arith.andi %67, %71 : vector<1x64xi1>
    %c2_i32_41 = arith.constant 2 : i32
    %73 = vector.broadcast %c2_i32_41 : i32 to vector<1x64xi32>
    %74 = arith.addi %9, %73 : vector<1x64xi32>
    %c0_i32_42 = arith.constant 0 : i32
    %75 = vector.broadcast %c0_i32_42 : i32 to vector<1x64xi32>
    %76 = arith.cmpi sge, %74, %75 : vector<1x64xi32>
    %c2_i32_43 = arith.constant 2 : i32
    %77 = vector.broadcast %c2_i32_43 : i32 to vector<1x64xi32>
    %78 = arith.addi %9, %77 : vector<1x64xi32>
    %c7_i32_44 = arith.constant 7 : i32
    %79 = vector.broadcast %c7_i32_44 : i32 to vector<1x64xi32>
    %80 = arith.cmpi sle, %78, %79 : vector<1x64xi32>
    %81 = arith.andi %76, %80 : vector<1x64xi1>
    %c0_i32_45 = arith.constant 0 : i32
    %82 = arith.index_cast %c0_i32_45 : i32 to index
    %c0_46 = arith.constant 0 : index
    %c0_47 = arith.constant 0 : index
    %83 = vector.load %arg1[%82, %c0_46, %c0_47] : memref<1x4x256xf32, #tpu.memory_space<vmem>>, vector<1x4x256xf32>
    %84 = vector.shape_cast %83 : vector<1x4x256xf32> to vector<4x256xf32>
    %cst = arith.constant dense<0.000000e+00> : vector<4x64xf32>
    %85 = tpu.matmul %84, %6, %cst {dimension_numbers = #tpu.dot_dimension_numbers<[1], [0], [0], [1], [0, 0, 1, 1], [], []>} : vector<4x256xf32>, vector<256x64xf32>, vector<4x64xf32> -> vector<4x64xf32>
    %86 = vector.extract_strided_slice %0 {offsets = [0, 0], sizes = [4, 1], strides = [1, 1]} : vector<4x4xf32> to vector<4x1xf32>
    %87 = vector.extract_strided_slice %85 {offsets = [0, 0], sizes = [1, 64], strides = [1, 1]} : vector<4x64xf32> to vector<1x64xf32>
    %88 = vector.broadcast %86 : vector<4x1xf32> to vector<4x64xf32>
    %89 = vector.broadcast %87 : vector<1x64xf32> to vector<4x64xf32>
    %90 = arith.mulf %88, %89 : vector<4x64xf32>
    %91 = vector.broadcast %1 : vector<4x1xf32> to vector<4x64xf32>
    %92 = arith.addf %91, %90 : vector<4x64xf32>
    %93 = vector.extract_strided_slice %0 {offsets = [0, 1], sizes = [4, 1], strides = [1, 1]} : vector<4x4xf32> to vector<4x1xf32>
    %94 = vector.extract_strided_slice %85 {offsets = [1, 0], sizes = [1, 64], strides = [1, 1]} : vector<4x64xf32> to vector<1x64xf32>
    %95 = vector.broadcast %93 : vector<4x1xf32> to vector<4x64xf32>
    %96 = vector.broadcast %94 : vector<1x64xf32> to vector<4x64xf32>
    %97 = arith.mulf %95, %96 : vector<4x64xf32>
    %98 = arith.addf %92, %97 : vector<4x64xf32>
    %99 = vector.extract_strided_slice %0 {offsets = [0, 2], sizes = [4, 1], strides = [1, 1]} : vector<4x4xf32> to vector<4x1xf32>
    %100 = vector.extract_strided_slice %85 {offsets = [2, 0], sizes = [1, 64], strides = [1, 1]} : vector<4x64xf32> to vector<1x64xf32>
    %101 = vector.broadcast %99 : vector<4x1xf32> to vector<4x64xf32>
    %102 = vector.broadcast %100 : vector<1x64xf32> to vector<4x64xf32>
    %103 = arith.mulf %101, %102 : vector<4x64xf32>
    %104 = arith.addf %98, %103 : vector<4x64xf32>
    %105 = vector.extract_strided_slice %0 {offsets = [0, 3], sizes = [4, 1], strides = [1, 1]} : vector<4x4xf32> to vector<4x1xf32>
    %106 = vector.extract_strided_slice %85 {offsets = [3, 0], sizes = [1, 64], strides = [1, 1]} : vector<4x64xf32> to vector<1x64xf32>
    %107 = vector.broadcast %105 : vector<4x1xf32> to vector<4x64xf32>
    %108 = vector.broadcast %106 : vector<1x64xf32> to vector<4x64xf32>
    %109 = arith.mulf %107, %108 : vector<4x64xf32>
    %110 = arith.addf %104, %109 : vector<4x64xf32>
    %111 = vector.extract_strided_slice %2 {offsets = [0, 2], sizes = [4, 1], strides = [1, 1]} : vector<4x5xf32> to vector<4x1xf32>
    %112 = vector.broadcast %111 : vector<4x1xf32> to vector<4x64xf32>
    %113 = arith.mulf %112, %110 : vector<4x64xf32>
    %114 = vector.extract_strided_slice %2 {offsets = [0, 0], sizes = [4, 1], strides = [1, 1]} : vector<4x5xf32> to vector<4x1xf32>
    %c2_i32_48 = arith.constant 2 : i32
    %115 = tpu.dynamic_rotate %110 by %c2_i32_48 dim 1 : vector<4x64xf32>, i32 -> vector<4x64xf32>
    %cst_49 = arith.constant 0.000000e+00 : f32
    %116 = vector.shape_cast %18 : vector<1x64xi1> to vector<1x64xi1>
    %117 = vector.broadcast %116 : vector<1x64xi1> to vector<4x64xi1>
    %118 = vector.broadcast %cst_49 : f32 to vector<4x64xf32>
    %119 = arith.select %117, %115, %118 : vector<4x64xi1>, vector<4x64xf32>
    %120 = vector.broadcast %114 : vector<4x1xf32> to vector<4x64xf32>
    %121 = arith.mulf %120, %119 : vector<4x64xf32>
    %122 = arith.addf %113, %121 : vector<4x64xf32>
    %123 = vector.extract_strided_slice %2 {offsets = [0, 1], sizes = [4, 1], strides = [1, 1]} : vector<4x5xf32> to vector<4x1xf32>
    %c1_i32_50 = arith.constant 1 : i32
    %124 = tpu.dynamic_rotate %110 by %c1_i32_50 dim 1 : vector<4x64xf32>, i32 -> vector<4x64xf32>
    %cst_51 = arith.constant 0.000000e+00 : f32
    %125 = vector.shape_cast %36 : vector<1x64xi1> to vector<1x64xi1>
    %126 = vector.broadcast %125 : vector<1x64xi1> to vector<4x64xi1>
    %127 = vector.broadcast %cst_51 : f32 to vector<4x64xf32>
    %128 = arith.select %126, %124, %127 : vector<4x64xi1>, vector<4x64xf32>
    %129 = vector.broadcast %123 : vector<4x1xf32> to vector<4x64xf32>
    %130 = arith.mulf %129, %128 : vector<4x64xf32>
    %131 = arith.addf %122, %130 : vector<4x64xf32>
    %132 = vector.extract_strided_slice %2 {offsets = [0, 3], sizes = [4, 1], strides = [1, 1]} : vector<4x5xf32> to vector<4x1xf32>
    %c63_i32 = arith.constant 63 : i32
    %133 = tpu.dynamic_rotate %110 by %c63_i32 dim 1 : vector<4x64xf32>, i32 -> vector<4x64xf32>
    %cst_52 = arith.constant 0.000000e+00 : f32
    %134 = vector.shape_cast %54 : vector<1x64xi1> to vector<1x64xi1>
    %135 = vector.broadcast %134 : vector<1x64xi1> to vector<4x64xi1>
    %136 = vector.broadcast %cst_52 : f32 to vector<4x64xf32>
    %137 = arith.select %135, %133, %136 : vector<4x64xi1>, vector<4x64xf32>
    %138 = vector.broadcast %132 : vector<4x1xf32> to vector<4x64xf32>
    %139 = arith.mulf %138, %137 : vector<4x64xf32>
    %140 = arith.addf %131, %139 : vector<4x64xf32>
    %141 = vector.extract_strided_slice %2 {offsets = [0, 4], sizes = [4, 1], strides = [1, 1]} : vector<4x5xf32> to vector<4x1xf32>
    %c62_i32 = arith.constant 62 : i32
    %142 = tpu.dynamic_rotate %110 by %c62_i32 dim 1 : vector<4x64xf32>, i32 -> vector<4x64xf32>
    %cst_53 = arith.constant 0.000000e+00 : f32
    %143 = vector.shape_cast %72 : vector<1x64xi1> to vector<1x64xi1>
    %144 = vector.broadcast %143 : vector<1x64xi1> to vector<4x64xi1>
    %145 = vector.broadcast %cst_53 : f32 to vector<4x64xf32>
    %146 = arith.select %144, %142, %145 : vector<4x64xi1>, vector<4x64xf32>
    %147 = vector.broadcast %141 : vector<4x1xf32> to vector<4x64xf32>
    %148 = arith.mulf %147, %146 : vector<4x64xf32>
    %149 = arith.addf %140, %148 : vector<4x64xf32>
    %150 = vector.broadcast %3 : vector<4x1xf32> to vector<4x64xf32>
    %151 = arith.addf %149, %150 : vector<4x64xf32>
    %152 = vector.extract_strided_slice %4 {offsets = [0, 2], sizes = [4, 1], strides = [1, 1]} : vector<4x5xf32> to vector<4x1xf32>
    %153 = vector.broadcast %152 : vector<4x1xf32> to vector<4x64xf32>
    %154 = arith.mulf %153, %151 : vector<4x64xf32>
    %155 = vector.extract_strided_slice %4 {offsets = [0, 0], sizes = [4, 1], strides = [1, 1]} : vector<4x5xf32> to vector<4x1xf32>
    %c16_i32 = arith.constant 16 : i32
    %156 = tpu.dynamic_rotate %151 by %c16_i32 dim 1 : vector<4x64xf32>, i32 -> vector<4x64xf32>
    %cst_54 = arith.constant 0.000000e+00 : f32
    %157 = vector.shape_cast %27 : vector<1x64xi1> to vector<1x64xi1>
    %158 = vector.broadcast %157 : vector<1x64xi1> to vector<4x64xi1>
    %159 = vector.broadcast %cst_54 : f32 to vector<4x64xf32>
    %160 = arith.select %158, %156, %159 : vector<4x64xi1>, vector<4x64xf32>
    %161 = vector.broadcast %155 : vector<4x1xf32> to vector<4x64xf32>
    %162 = arith.mulf %161, %160 : vector<4x64xf32>
    %163 = arith.addf %154, %162 : vector<4x64xf32>
    %164 = vector.extract_strided_slice %4 {offsets = [0, 1], sizes = [4, 1], strides = [1, 1]} : vector<4x5xf32> to vector<4x1xf32>
    %c8_i32 = arith.constant 8 : i32
    %165 = tpu.dynamic_rotate %151 by %c8_i32 dim 1 : vector<4x64xf32>, i32 -> vector<4x64xf32>
    %cst_55 = arith.constant 0.000000e+00 : f32
    %166 = vector.shape_cast %45 : vector<1x64xi1> to vector<1x64xi1>
    %167 = vector.broadcast %166 : vector<1x64xi1> to vector<4x64xi1>
    %168 = vector.broadcast %cst_55 : f32 to vector<4x64xf32>
    %169 = arith.select %167, %165, %168 : vector<4x64xi1>, vector<4x64xf32>
    %170 = vector.broadcast %164 : vector<4x1xf32> to vector<4x64xf32>
    %171 = arith.mulf %170, %169 : vector<4x64xf32>
    %172 = arith.addf %163, %171 : vector<4x64xf32>
    %173 = vector.extract_strided_slice %4 {offsets = [0, 3], sizes = [4, 1], strides = [1, 1]} : vector<4x5xf32> to vector<4x1xf32>
    %c56_i32 = arith.constant 56 : i32
    %174 = tpu.dynamic_rotate %151 by %c56_i32 dim 1 : vector<4x64xf32>, i32 -> vector<4x64xf32>
    %cst_56 = arith.constant 0.000000e+00 : f32
    %175 = vector.shape_cast %63 : vector<1x64xi1> to vector<1x64xi1>
    %176 = vector.broadcast %175 : vector<1x64xi1> to vector<4x64xi1>
    %177 = vector.broadcast %cst_56 : f32 to vector<4x64xf32>
    %178 = arith.select %176, %174, %177 : vector<4x64xi1>, vector<4x64xf32>
    %179 = vector.broadcast %173 : vector<4x1xf32> to vector<4x64xf32>
    %180 = arith.mulf %179, %178 : vector<4x64xf32>
    %181 = arith.addf %172, %180 : vector<4x64xf32>
    %182 = vector.extract_strided_slice %4 {offsets = [0, 4], sizes = [4, 1], strides = [1, 1]} : vector<4x5xf32> to vector<4x1xf32>
    %c48_i32 = arith.constant 48 : i32
    %183 = tpu.dynamic_rotate %151 by %c48_i32 dim 1 : vector<4x64xf32>, i32 -> vector<4x64xf32>
    %cst_57 = arith.constant 0.000000e+00 : f32
    %184 = vector.shape_cast %81 : vector<1x64xi1> to vector<1x64xi1>
    %185 = vector.broadcast %184 : vector<1x64xi1> to vector<4x64xi1>
    %186 = vector.broadcast %cst_57 : f32 to vector<4x64xf32>
    %187 = arith.select %185, %183, %186 : vector<4x64xi1>, vector<4x64xf32>
    %188 = vector.broadcast %182 : vector<4x1xf32> to vector<4x64xf32>
    %189 = arith.mulf %188, %187 : vector<4x64xf32>
    %190 = arith.addf %181, %189 : vector<4x64xf32>
    %191 = vector.broadcast %5 : vector<4x1xf32> to vector<4x64xf32>
    %192 = arith.addf %190, %191 : vector<4x64xf32>
    %cst_58 = arith.constant 5.000000e-01 : f32
    %193 = vector.broadcast %cst_58 : f32 to vector<4x64xf32>
    %194 = arith.mulf %193, %192 : vector<4x64xf32>
    %195 = math.tanh %194 : vector<4x64xf32>
    %cst_59 = arith.constant 1.000000e+00 : f32
    %196 = vector.broadcast %cst_59 : f32 to vector<4x64xf32>
    %197 = arith.addf %195, %196 : vector<4x64xf32>
    %cst_60 = arith.constant 5.000000e-01 : f32
    %198 = vector.broadcast %cst_60 : f32 to vector<4x64xf32>
    %199 = arith.mulf %198, %197 : vector<4x64xf32>
    %cst_61 = arith.constant dense<0.000000e+00> : vector<4x256xf32>
    %200 = tpu.matmul %199, %7, %cst_61 {dimension_numbers = #tpu.dot_dimension_numbers<[1], [0], [0], [1], [0, 0, 1, 1], [], []>} : vector<4x64xf32>, vector<64x256xf32>, vector<4x256xf32> -> vector<4x256xf32>
    %201 = arith.mulf %84, %200 : vector<4x256xf32>
    %202 = arith.index_cast %c0_i32_45 : i32 to index
    %c0_62 = arith.constant 0 : index
    %c0_63 = arith.constant 0 : index
    %203 = vector.load %arg12[%202, %c0_62, %c0_63] : memref<1x4x256xf32, #tpu.memory_space<vmem>>, vector<1x4x256xf32>
    %204 = vector.shape_cast %203 : vector<1x4x256xf32> to vector<4x256xf32>
    %205 = vector.shape_cast %201 : vector<4x256xf32> to vector<1x4x256xf32>
    tpu.vector_store %arg12[%202, %c0_62, %c0_63], %205 {strides = array<i32>} : memref<1x4x256xf32, #tpu.memory_space<vmem>>, vector<1x4x256xf32>,
    %c1_i32_64 = arith.constant 1 : i32
    return
  }
  func.func @transform_0(%arg0: i32) -> (i32, i32, i32) {
    %c0_i32 = arith.constant 0 : i32
    %c0_i32_0 = arith.constant 0 : i32
    %c0_i32_1 = arith.constant 0 : i32
    return %arg0, %c0_i32, %c0_i32_0 : i32, i32, i32
  }
  func.func @transform_1(%arg0: i32) -> (i32, i32) {
    %c0_i32 = arith.constant 0 : i32
    %c0_i32_0 = arith.constant 0 : i32
    %c0_i32_1 = arith.constant 0 : i32
    return %c0_i32, %c0_i32_0 : i32, i32
  }
  func.func @transform_2(%arg0: i32) -> (i32, i32) {
    %c0_i32 = arith.constant 0 : i32
    %c0_i32_0 = arith.constant 0 : i32
    %c0_i32_1 = arith.constant 0 : i32
    return %c0_i32, %c0_i32_0 : i32, i32
  }
  func.func @transform_3(%arg0: i32) -> (i32, i32) {
    %c0_i32 = arith.constant 0 : i32
    %c0_i32_0 = arith.constant 0 : i32
    %c0_i32_1 = arith.constant 0 : i32
    return %c0_i32, %c0_i32_0 : i32, i32
  }
  func.func @transform_4(%arg0: i32) -> (i32, i32) {
    %c0_i32 = arith.constant 0 : i32
    %c0_i32_0 = arith.constant 0 : i32
    %c0_i32_1 = arith.constant 0 : i32
    return %c0_i32, %c0_i32_0 : i32, i32
  }
  func.func @transform_5(%arg0: i32) -> (i32, i32) {
    %c0_i32 = arith.constant 0 : i32
    %c0_i32_0 = arith.constant 0 : i32
    %c0_i32_1 = arith.constant 0 : i32
    return %c0_i32, %c0_i32_0 : i32, i32
  }
  func.func @transform_6(%arg0: i32) -> (i32, i32) {
    %c0_i32 = arith.constant 0 : i32
    %c0_i32_0 = arith.constant 0 : i32
    %c0_i32_1 = arith.constant 0 : i32
    return %c0_i32, %c0_i32_0 : i32, i32
  }
  func.func @transform_7(%arg0: i32) -> (i32, i32) {
    %c0_i32 = arith.constant 0 : i32
    %c0_i32_0 = arith.constant 0 : i32
    %c0_i32_1 = arith.constant 0 : i32
    return %c0_i32, %c0_i32_0 : i32, i32
  }
  func.func @transform_8(%arg0: i32) -> (i32, i32) {
    %c0_i32 = arith.constant 0 : i32
    %c0_i32_0 = arith.constant 0 : i32
    %c0_i32_1 = arith.constant 0 : i32
    return %c0_i32, %c0_i32_0 : i32, i32
  }
  func.func @transform_9(%arg0: i32) -> (i32, i32) {
    %c0_i32 = arith.constant 0 : i32
    %c0_i32_0 = arith.constant 0 : i32
    %c0_i32_1 = arith.constant 0 : i32
    return %c0_i32, %c0_i32_0 : i32, i32
  }
  func.func @transform_10(%arg0: i32) -> (i32, i32) {
    %c0_i32 = arith.constant 0 : i32
    %c0_i32_0 = arith.constant 0 : i32
    %c0_i32_1 = arith.constant 0 : i32
    return %c0_i32, %c0_i32_0 : i32, i32
  }
  func.func @transform_11(%arg0: i32) -> (i32, i32, i32) {
    %c0_i32 = arith.constant 0 : i32
    %c0_i32_0 = arith.constant 0 : i32
    %c0_i32_1 = arith.constant 0 : i32
    return %arg0, %c0_i32, %c0_i32_0 : i32, i32, i32
  }
}

</mosaic_0001>

<llo_original>
// kernel: tpu_custom_call.1
$region0: #{tpu_custom_call.1}
  #allocation0 [shape = 'u32[]', space=smem, size = 0x4, offset = 0x4, fixed_abs, tag = 'smem constant byte address 0x4 - core index']
  #allocation1 [shape = 'u32[72,128]{1,0:T(1,128)}', space=vmem, size = 0x9000, scoped, tag = 'internal scratch']
  %s0 = inlined_call_operand.vmem [shape: f32[2,4,256], index: 0, kind: input, shape index: {}]
  %s1 = inlined_call_operand.vmem [shape: f32[256,64], index: 1, kind: input, shape index: {}]
  %s2 = inlined_call_operand.vmem [shape: f32[64,256], index: 2, kind: input, shape index: {}]
  %s3 = inlined_call_operand.vmem [shape: s32[1,64], index: 3, kind: input, shape index: {}]
  %s4 = inlined_call_operand.vmem [shape: s32[1,64], index: 4, kind: input, shape index: {}]
  %s5 = inlined_call_operand.vmem [shape: f32[4,4], index: 5, kind: input, shape index: {}]
  %s6 = inlined_call_operand.vmem [shape: f32[4,1], index: 6, kind: input, shape index: {}]
  %s7 = inlined_call_operand.vmem [shape: f32[4,5], index: 7, kind: input, shape index: {}]
  %s8 = inlined_call_operand.vmem [shape: f32[4,1], index: 8, kind: input, shape index: {}]
  %s9 = inlined_call_operand.vmem [shape: f32[4,5], index: 9, kind: input, shape index: {}]
  %s10 = inlined_call_operand.vmem [shape: f32[4,1], index: 10, kind: input, shape index: {}]
  %s11 = inlined_call_operand.hbm [shape: f32[2,4,256], index: 11, kind: output, shape index: {}]
  %s12 = sld [smem:[#allocation0]]
  $region77: #{tpu_custom_call.1} parent=0
    _
  %s14 = ssub.s32 1, %s12
  %s15 = scalar_select 0, %s14, %s12
  $region1: #{tpu_custom_call.1} parent=0
    #allocation2 [shape = 'u8[8192]{0}', space=vmem, size = 0x2000, scoped, tag = 'output window, operand 0']
    #allocation3 [shape = 's32[2]{0}', space=sflag, size = 0x8, scoped, tag = 'scoped memory for tpu_custom_call.1']
    %16 = vsyncpa [#allocation3], 0
    %s17 = scalar_lea.sflag [#allocation3], 1
    %18 = vsyncpa %s17, 0
    loop: start=0, step=1, limit=4
    $region2: #{tpu_custom_call.1} parent=1 // loop_pre_header
      _
    $region3: #{tpu_custom_call.1} parent=1 // loop_header
      %s20 = sphi 0, %s24
      %p21 = scmp.ge.s32.totalorder %s20, 4
      %s30 = sphi 0, %s32
      %s33 = sphi 0, %s30
      %s34 = sphi 0, %s33
      %s50 = sphi 0, %s34
      %s54 = sphi 0, %s54
      %s56 = sphi 0, %s54
      %s57 = sphi 0, %s56
      %s71 = sphi 0, %s57
      %s75 = sphi 0, %s75
      %s77 = sphi 0, %s75
      %s78 = sphi 0, %s77
      %s92 = sphi 0, %s78
      %s96 = sphi 0, %s96
      %s98 = sphi 0, %s96
      %s99 = sphi 0, %s98
      %s113 = sphi 0, %s99
      %s117 = sphi 0, %s117
      %s119 = sphi 0, %s117
      %s120 = sphi 0, %s119
      %s134 = sphi 0, %s120
      %s138 = sphi 0, %s138
      %s140 = sphi 0, %s138
      %s141 = sphi 0, %s140
      %s155 = sphi 0, %s141
      %s159 = sphi 0, %s159
      %s161 = sphi 0, %s159
      %s162 = sphi 0, %s161
      %s176 = sphi 0, %s162
      %s180 = sphi 0, %s180
      %s182 = sphi 0, %s180
      %s183 = sphi 0, %s182
      %s197 = sphi 0, %s183
      %s201 = sphi 0, %s201
      %s203 = sphi 0, %s201
      %s204 = sphi 0, %s203
      %s218 = sphi 0, %s204
      %s222 = sphi 0, %s222
      %s224 = sphi 0, %s222
      %s225 = sphi 0, %s224
      %s239 = sphi 0, %s225
      %s243 = sphi 0, %s243
      %s245 = sphi 0, %s243
      %s246 = sphi 0, %s245
      %s260 = sphi 0, %s246
      %s266 = sphi 0, %s268
      %s269 = sphi 0, %s266
      %s270 = sphi 0, %s269
      %s286 = sphi 0, %s270
    $region4: #{tpu_custom_call.1} parent=1 // loop_header_branch
      %23 = sbr.rel (%p21) target = $region8
    $region5: #{tpu_custom_call.1} parent=1 // loop_body
      %s25 = ssub.s32 %s20, 1
      %s26 = ssub.s32 %s20, 2
      %s27 = sadd.s32 %s20, 1
      %s28 = ssub.s32 %s20, %s27
      %p29 = scmp.eq.s32.totalorder %s28, 0
      %s31 = sadd.s32 %s30, 1
      %s32 = scalar_select %p29, %s30, %s31
      %p35 = pneg %p29
      %p36 = scmp.eq.s32.totalorder %s20, 1
      %p37 = por %p35, %p36
      %p38 = scmp.ne.s32.totalorder %s30, %s33
      %p39 = scmp.eq.s32.totalorder %s20, 0
      %p40 = por %p38, %p39
      %p41 = scmp.ne.s32.totalorder %s30, %s33
      %p42 = scmp.eq.s32.totalorder %s25, 1
      %p43 = por %p41, %p42
      %p44 = scmp.ne.s32.totalorder %s33, %s34
      %p45 = scmp.eq.s32.totalorder %s25, 0
      %p46 = por %p44, %p45
      %p47 = scmp.ne.s32.totalorder %s33, %s34
      %p48 = scmp.eq.s32.totalorder %s26, 1
      %p49 = por %p47, %p48
      %p51 = scmp.ne.s32.totalorder %s34, %s50
      %p52 = scmp.eq.s32.totalorder %s26, 0
      %p53 = por %p51, %p52
      %s55 = sadd.s32 %s54, 1
      %p58 = scmp.eq.s32.totalorder %s20, 1
      %p59 = scmp.ne.s32.totalorder %s54, %s56
      %p60 = scmp.eq.s32.totalorder %s20, 0
      %p61 = por %p59, %p60
      %p62 = scmp.ne.s32.totalorder %s54, %s56
      %p63 = scmp.eq.s32.totalorder %s25, 1
      %p64 = por %p62, %p63
      %p65 = scmp.ne.s32.totalorder %s56, %s57
      %p66 = scmp.eq.s32.totalorder %s25, 0
      %p67 = por %p65, %p66
      %p68 = scmp.ne.s32.totalorder %s56, %s57
      %p69 = scmp.eq.s32.totalorder %s26, 1
      %p70 = por %p68, %p69
      %p72 = scmp.ne.s32.totalorder %s57, %s71
      %p73 = scmp.eq.s32.totalorder %s26, 0
      %p74 = por %p72, %p73
      %s76 = sadd.s32 %s75, 1
      %p79 = scmp.eq.s32.totalorder %s20, 1
      %p80 = scmp.ne.s32.totalorder %s75, %s77
      %p81 = scmp.eq.s32.totalorder %s20, 0
      %p82 = por %p80, %p81
      %p83 = scmp.ne.s32.totalorder %s75, %s77
      %p84 = scmp.eq.s32.totalorder %s25, 1
      %p85 = por %p83, %p84
      %p86 = scmp.ne.s32.totalorder %s77, %s78
      %p87 = scmp.eq.s32.totalorder %s25, 0
      %p88 = por %p86, %p87
      %p89 = scmp.ne.s32.totalorder %s77, %s78
      %p90 = scmp.eq.s32.totalorder %s26, 1
      %p91 = por %p89, %p90
      %p93 = scmp.ne.s32.totalorder %s78, %s92
      %p94 = scmp.eq.s32.totalorder %s26, 0
      %p95 = por %p93, %p94
      %s97 = sadd.s32 %s96, 1
      %p100 = scmp.eq.s32.totalorder %s20, 1
      %p101 = scmp.ne.s32.totalorder %s96, %s98
      %p102 = scmp.eq.s32.totalorder %s20, 0
      %p103 = por %p101, %p102
      %p104 = scmp.ne.s32.totalorder %s96, %s98
      %p105 = scmp.eq.s32.totalorder %s25, 1
      %p106 = por %p104, %p105
      %p107 = scmp.ne.s32.totalorder %s98, %s99
      %p108 = scmp.eq.s32.totalorder %s25, 0
      %p109 = por %p107, %p108
      %p110 = scmp.ne.s32.totalorder %s98, %s99
      %p111 = scmp.eq.s32.totalorder %s26, 1
      %p112 = por %p110, %p111
      %p114 = scmp.ne.s32.totalorder %s99, %s113
      %p115 = scmp.eq.s32.totalorder %s26, 0
      %p116 = por %p114, %p115
      %s118 = sadd.s32 %s117, 1
      %p121 = scmp.eq.s32.totalorder %s20, 1
      %p122 = scmp.ne.s32.totalorder %s117, %s119
      %p123 = scmp.eq.s32.totalorder %s20, 0
      %p124 = por %p122, %p123
      %p125 = scmp.ne.s32.totalorder %s117, %s119
      %p126 = scmp.eq.s32.totalorder %s25, 1
      %p127 = por %p125, %p126
      %p128 = scmp.ne.s32.totalorder %s119, %s120
      %p129 = scmp.eq.s32.totalorder %s25, 0
      %p130 = por %p128, %p129
      %p131 = scmp.ne.s32.totalorder %s119, %s120
      %p132 = scmp.eq.s32.totalorder %s26, 1
      %p133 = por %p131, %p132
      %p135 = scmp.ne.s32.totalorder %s120, %s134
      %p136 = scmp.eq.s32.totalorder %s26, 0
      %p137 = por %p135, %p136
      %s139 = sadd.s32 %s138, 1
      %p142 = scmp.eq.s32.totalorder %s20, 1
      %p143 = scmp.ne.s32.totalorder %s138, %s140
      %p144 = scmp.eq.s32.totalorder %s20, 0
      %p145 = por %p143, %p144
      %p146 = scmp.ne.s32.totalorder %s138, %s140
      %p147 = scmp.eq.s32.totalorder %s25, 1
      %p148 = por %p146, %p147
      %p149 = scmp.ne.s32.totalorder %s140, %s141
      %p150 = scmp.eq.s32.totalorder %s25, 0
      %p151 = por %p149, %p150
      %p152 = scmp.ne.s32.totalorder %s140, %s141
      %p153 = scmp.eq.s32.totalorder %s26, 1
      %p154 = por %p152, %p153
      %p156 = scmp.ne.s32.totalorder %s141, %s155
      %p157 = scmp.eq.s32.totalorder %s26, 0
      %p158 = por %p156, %p157
      %s160 = sadd.s32 %s159, 1
      %p163 = scmp.eq.s32.totalorder %s20, 1
      %p164 = scmp.ne.s32.totalorder %s159, %s161
      %p165 = scmp.eq.s32.totalorder %s20, 0
      %p166 = por %p164, %p165
      %p167 = scmp.ne.s32.totalorder %s159, %s161
      %p168 = scmp.eq.s32.totalorder %s25, 1
      %p169 = por %p167, %p168
      %p170 = scmp.ne.s32.totalorder %s161, %s162
      %p171 = scmp.eq.s32.totalorder %s25, 0
      %p172 = por %p170, %p171
      %p173 = scmp.ne.s32.totalorder %s161, %s162
      %p174 = scmp.eq.s32.totalorder %s26, 1
      %p175 = por %p173, %p174
      %p177 = scmp.ne.s32.totalorder %s162, %s176
      %p178 = scmp.eq.s32.totalorder %s26, 0
      %p179 = por %p177, %p178
      %s181 = sadd.s32 %s180, 1
      %p184 = scmp.eq.s32.totalorder %s20, 1
      %p185 = scmp.ne.s32.totalorder %s180, %s182
      %p186 = scmp.eq.s32.totalorder %s20, 0
      %p187 = por %p185, %p186
      %p188 = scmp.ne.s32.totalorder %s180, %s182
      %p189 = scmp.eq.s32.totalorder %s25, 1
      %p190 = por %p188, %p189
      %p191 = scmp.ne.s32.totalorder %s182, %s183
      %p192 = scmp.eq.s32.totalorder %s25, 0
      %p193 = por %p191, %p192
      %p194 = scmp.ne.s32.totalorder %s182, %s183
      %p195 = scmp.eq.s32.totalorder %s26, 1
      %p196 = por %p194, %p195
      %p198 = scmp.ne.s32.totalorder %s183, %s197
      %p199 = scmp.eq.s32.totalorder %s26, 0
      %p200 = por %p198, %p199
      %s202 = sadd.s32 %s201, 1
      %p205 = scmp.eq.s32.totalorder %s20, 1
      %p206 = scmp.ne.s32.totalorder %s201, %s203
      %p207 = scmp.eq.s32.totalorder %s20, 0
      %p208 = por %p206, %p207
      %p209 = scmp.ne.s32.totalorder %s201, %s203
      %p210 = scmp.eq.s32.totalorder %s25, 1
      %p211 = por %p209, %p210
      %p212 = scmp.ne.s32.totalorder %s203, %s204
      %p213 = scmp.eq.s32.totalorder %s25, 0
      %p214 = por %p212, %p213
      %p215 = scmp.ne.s32.totalorder %s203, %s204
      %p216 = scmp.eq.s32.totalorder %s26, 1
      %p217 = por %p215, %p216
      %p219 = scmp.ne.s32.totalorder %s204, %s218
      %p220 = scmp.eq.s32.totalorder %s26, 0
      %p221 = por %p219, %p220
      %s223 = sadd.s32 %s222, 1
      %p226 = scmp.eq.s32.totalorder %s20, 1
      %p227 = scmp.ne.s32.totalorder %s222, %s224
      %p228 = scmp.eq.s32.totalorder %s20, 0
      %p229 = por %p227, %p228
      %p230 = scmp.ne.s32.totalorder %s222, %s224
      %p231 = scmp.eq.s32.totalorder %s25, 1
      %p232 = por %p230, %p231
      %p233 = scmp.ne.s32.totalorder %s224, %s225
      %p234 = scmp.eq.s32.totalorder %s25, 0
      %p235 = por %p233, %p234
      %p236 = scmp.ne.s32.totalorder %s224, %s225
      %p237 = scmp.eq.s32.totalorder %s26, 1
      %p238 = por %p236, %p237
      %p240 = scmp.ne.s32.totalorder %s225, %s239
      %p241 = scmp.eq.s32.totalorder %s26, 0
      %p242 = por %p240, %p241
      %s244 = sadd.s32 %s243, 1
      %p247 = scmp.eq.s32.totalorder %s20, 1
      %p248 = scmp.ne.s32.totalorder %s243, %s245
      %p249 = scmp.eq.s32.totalorder %s20, 0
      %p250 = por %p248, %p249
      %p251 = scmp.ne.s32.totalorder %s243, %s245
      %p252 = scmp.eq.s32.totalorder %s25, 1
      %p253 = por %p251, %p252
      %p254 = scmp.ne.s32.totalorder %s245, %s246
      %p255 = scmp.eq.s32.totalorder %s25, 0
      %p256 = por %p254, %p255
      %p257 = scmp.ne.s32.totalorder %s245, %s246
      %p258 = scmp.eq.s32.totalorder %s26, 1
      %p259 = por %p257, %p258
      %p261 = scmp.ne.s32.totalorder %s246, %s260
      %p262 = scmp.eq.s32.totalorder %s26, 0
      %p263 = por %p261, %p262
      %s264 = ssub.s32 %s20, %s27
      %p265 = scmp.eq.s32.totalorder %s264, 0
      %s267 = sadd.s32 %s266, 1
      %s268 = scalar_select %p265, %s266, %s267
      %p271 = pneg %p265
      %p272 = scmp.eq.s32.totalorder %s20, 1
      %p273 = por %p271, %p272
      %p274 = scmp.ne.s32.totalorder %s266, %s269
      %p275 = scmp.eq.s32.totalorder %s20, 0
      %p276 = por %p274, %p275
      %p277 = scmp.ne.s32.totalorder %s266, %s269
      %p278 = scmp.eq.s32.totalorder %s25, 1
      %p279 = por %p277, %p278
      %p280 = scmp.ne.s32.totalorder %s269, %s270
      %p281 = scmp.eq.s32.totalorder %s25, 0
      %p282 = por %p280, %p281
      %p283 = scmp.ne.s32.totalorder %s269, %s270
      %p284 = scmp.eq.s32.totalorder %s26, 1
      %p285 = por %p283, %p284
      %p287 = scmp.ne.s32.totalorder %s270, %s286
      %p288 = scmp.eq.s32.totalorder %s26, 0
      %p289 = por %p287, %p288
      %p290 = scmp.le.s32.totalorder 1, %s20
      %p291 = scmp.lt.s32.totalorder %s20, 3
      %p292 = pnand %p290, %p291
      %p293 = pneg %p292
      // Predicated region
      $region9: #{tpu_custom_call.1} parent=5 // pred_check
        _
      $region10: #{tpu_custom_call.1} parent=5 // pred_check_branch
        %295 = sbr.rel (%p292) target = $region12
      $region11: #{tpu_custom_call.1} parent=5 // pred_region
        %s296 = ssub.s32 %s20, 1
        // Predicated region
        $region13: #{tpu_custom_call.1} parent=11 // pred_check
          %p297 = pneg %p67
        $region14: #{tpu_custom_call.1} parent=11 // pred_check_branch
          %299 = sbr.rel (%p297) target = $region16
        $region15: #{tpu_custom_call.1} parent=11 // pred_region
          _
        $region16: #{tpu_custom_call.1} parent=11 // pred_fallthru
          _
        // Predicated region
        $region17: #{tpu_custom_call.1} parent=11 // pred_check
          %p300 = pneg %p88
        $region18: #{tpu_custom_call.1} parent=11 // pred_check_branch
          %302 = sbr.rel (%p300) target = $region20
        $region19: #{tpu_custom_call.1} parent=11 // pred_region
          _
        $region20: #{tpu_custom_call.1} parent=11 // pred_fallthru
          _
        // Predicated region
        $region21: #{tpu_custom_call.1} parent=11 // pred_check
          %p303 = pneg %p109
        $region22: #{tpu_custom_call.1} parent=11 // pred_check_branch
          %305 = sbr.rel (%p303) target = $region24
        $region23: #{tpu_custom_call.1} parent=11 // pred_region
          _
        $region24: #{tpu_custom_call.1} parent=11 // pred_fallthru
          _
        // Predicated region
        $region25: #{tpu_custom_call.1} parent=11 // pred_check
          %p306 = pneg %p130
        $region26: #{tpu_custom_call.1} parent=11 // pred_check_branch
          %308 = sbr.rel (%p306) target = $region28
        $region27: #{tpu_custom_call.1} parent=11 // pred_region
          _
        $region28: #{tpu_custom_call.1} parent=11 // pred_fallthru
          _
        // Predicated region
        $region29: #{tpu_custom_call.1} parent=11 // pred_check
          %p309 = pneg %p151
        $region30: #{tpu_custom_call.1} parent=11 // pred_check_branch
          %311 = sbr.rel (%p309) target = $region32
        $region31: #{tpu_custom_call.1} parent=11 // pred_region
          _
        $region32: #{tpu_custom_call.1} parent=11 // pred_fallthru
          _
        // Predicated region
        $region33: #{tpu_custom_call.1} parent=11 // pred_check
          %p312 = pneg %p172
        $region34: #{tpu_custom_call.1} parent=11 // pred_check_branch
          %314 = sbr.rel (%p312) target = $region36
        $region35: #{tpu_custom_call.1} parent=11 // pred_region
          _
        $region36: #{tpu_custom_call.1} parent=11 // pred_fallthru
          _
        // Predicated region
        $region37: #{tpu_custom_call.1} parent=11 // pred_check
          %p315 = pneg %p193
        $region38: #{tpu_custom_call.1} parent=11 // pred_check_branch
          %317 = sbr.rel (%p315) target = $region40
        $region39: #{tpu_custom_call.1} parent=11 // pred_region
          _
        $region40: #{tpu_custom_call.1} parent=11 // pred_fallthru
          _
        // Predicated region
        $region41: #{tpu_custom_call.1} parent=11 // pred_check
          %p318 = pneg %p214
        $region42: #{tpu_custom_call.1} parent=11 // pred_check_branch
          %320 = sbr.rel (%p318) target = $region44
        $region43: #{tpu_custom_call.1} parent=11 // pred_region
          _
        $region44: #{tpu_custom_call.1} parent=11 // pred_fallthru
          _
        // Predicated region
        $region45: #{tpu_custom_call.1} parent=11 // pred_check
          %p321 = pneg %p235
        $region46: #{tpu_custom_call.1} parent=11 // pred_check_branch
          %323 = sbr.rel (%p321) target = $region48
        $region47: #{tpu_custom_call.1} parent=11 // pred_region
          _
        $region48: #{tpu_custom_call.1} parent=11 // pred_fallthru
          _
        // Predicated region
        $region49: #{tpu_custom_call.1} parent=11 // pred_check
          %p324 = pneg %p256
        $region50: #{tpu_custom_call.1} parent=11 // pred_check_branch
          %326 = sbr.rel (%p324) target = $region52
        $region51: #{tpu_custom_call.1} parent=11 // pred_region
          _
        $region52: #{tpu_custom_call.1} parent=11 // pred_fallthru
          _
      $region12: #{tpu_custom_call.1} parent=5 // pred_fallthru
        _
      %p327 = scmp.lt.s32.totalorder %s20, 2
      // Predicated region
      $region53: #{tpu_custom_call.1} parent=5 // pred_check
        %p328 = pneg %p327
      $region54: #{tpu_custom_call.1} parent=5 // pred_check_branch
        %330 = sbr.rel (%p328) target = $region56
      $region55: #{tpu_custom_call.1} parent=5 // pred_region
        // Predicated region
        $region57: #{tpu_custom_call.1} parent=55 // pred_check
          %p331 = pneg %p40
        $region58: #{tpu_custom_call.1} parent=55 // pred_check_branch
          %333 = sbr.rel (%p331) target = $region60
        $region59: #{tpu_custom_call.1} parent=55 // pred_region
          %p334 = scmp.lt.s32.totalorder %s20, 1
          %s335 = scalar_select %p334, %s20, 1
          %s336 = smul.addr %s335, 2
          %s337 = smul.addr %s336, 4
          %s338 = scalar_lea.vmem %s0, %s337
        $region60: #{tpu_custom_call.1} parent=55 // pred_fallthru
          _
      $region56: #{tpu_custom_call.1} parent=5 // pred_fallthru
        _
      %p339 = scmp.le.s32.totalorder 1, %s20
      %p340 = scmp.lt.s32.totalorder %s20, 3
      %p341 = pnand %p339, %p340
      %p342 = pneg %p341
      // Predicated region
      $region61: #{tpu_custom_call.1} parent=5 // pred_check
        _
      $region62: #{tpu_custom_call.1} parent=5 // pred_check_branch
        %344 = sbr.rel (%p341) target = $region64
      $region63: #{tpu_custom_call.1} parent=5 // pred_region
        %s345 = ssub.s32 %s20, 1
        %p346 = scmp.lt.s32.totalorder %s25, 1
        %s347 = scalar_select %p346, %s25, 1
        %s348 = smul.addr %s347, 2
        %s349 = smul.addr %s348, 4
        %s350 = scalar_lea.vmem %s0, %s349
        %p351 = pneg %p46
        %p352 = pneg %p43
        %p353 = pneg %p67
        %p354 = pneg %p64
        %p355 = pneg %p88
        %p356 = pneg %p85
        %p357 = pneg %p109
        %p358 = pneg %p106
        %p359 = pneg %p130
        %p360 = pneg %p127
        %p361 = pneg %p151
        %p362 = pneg %p148
        %p363 = pneg %p172
        %p364 = pneg %p169
        %p365 = pneg %p193
        %p366 = pneg %p190
        %p367 = pneg %p214
        %p368 = pneg %p211
        %p369 = pneg %p235
        %p370 = pneg %p232
        %p371 = pneg %p256
        %p372 = pneg %p253
        %p373 = pneg %p282
        %p374 = pneg %p279
        %s375 = sand.u32 %s269, 1
        %s376 = scalar_lea.sflag [#allocation3], %s375
        %s377 = sand.u32 %s269, 1
        %s378 = smul.addr %s377, 8
        %s379 = scalar_lea.vmem [#allocation2], %s378
        %p380 = scmp.lt.s32.totalorder %s25, 1
        %s381 = scalar_select %p380, %s25, 1
        %s382 = smul.addr %s381, 2
        %s383 = smul.addr %s382, 4
        %s384 = scalar_lea.vmem %s0, %s383
        %v385 = vld [vmem:[%s5] sm:$0xf]
        %v386 = vld [vmem:[%s6] sm:$0xf]
        %v387 = vld [vmem:[%s7] sm:$0xf]
        %v388 = vld [vmem:[%s8] sm:$0xf]
        %v389 = vld [vmem:[%s9] sm:$0xf]
        %v390 = vld [vmem:[%s10] sm:$0xf]
        %v391 = vld [vmem:[%s1] sm:$0xff]
        %v392 = vld [vmem:[%s1 + $0x8] sm:$0xff]
        %v393 = vld [vmem:[%s1 + $0x10] sm:$0xff]
        %v394 = vld [vmem:[%s1 + $0x18] sm:$0xff]
        %v395 = vld [vmem:[%s1 + $0x20] sm:$0xff]
        %v396 = vld [vmem:[%s1 + $0x28] sm:$0xff]
        %v397 = vld [vmem:[%s1 + $0x30] sm:$0xff]
        %v398 = vld [vmem:[%s1 + $0x38] sm:$0xff]
        %v399 = vld [vmem:[%s1 + $0x40] sm:$0xff]
        %v400 = vld [vmem:[%s1 + $0x48] sm:$0xff]
        %v401 = vld [vmem:[%s1 + $0x50] sm:$0xff]
        %v402 = vld [vmem:[%s1 + $0x58] sm:$0xff]
        %v403 = vld [vmem:[%s1 + $0x60] sm:$0xff]
        %v404 = vld [vmem:[%s1 + $0x68] sm:$0xff]
        %v405 = vld [vmem:[%s1 + $0x70] sm:$0xff]
        %v406 = vld [vmem:[%s1 + $0x78] sm:$0xff]
        %v407 = vld [vmem:[%s1 + $0x80] sm:$0xff]
        %v408 = vld [vmem:[%s1 + $0x88] sm:$0xff]
        %v409 = vld [vmem:[%s1 + $0x90] sm:$0xff]
        %v410 = vld [vmem:[%s1 + $0x98] sm:$0xff]
        %v411 = vld [vmem:[%s1 + $0xa0] sm:$0xff]
        %v412 = vld [vmem:[%s1 + $0xa8] sm:$0xff]
        %v413 = vld [vmem:[%s1 + $0xb0] sm:$0xff]
        %v414 = vld [vmem:[%s1 + $0xb8] sm:$0xff]
        %v415 = vld [vmem:[%s1 + $0xc0] sm:$0xff]
        %v416 = vld [vmem:[%s1 + $0xc8] sm:$0xff]
        %v417 = vld [vmem:[%s1 + $0xd0] sm:$0xff]
        %v418 = vld [vmem:[%s1 + $0xd8] sm:$0xff]
        %v419 = vld [vmem:[%s1 + $0xe0] sm:$0xff]
        %v420 = vld [vmem:[%s1 + $0xe8] sm:$0xff]
        %v421 = vld [vmem:[%s1 + $0xf0] sm:$0xff]
        %v422 = vld [vmem:[%s1 + $0xf8] sm:$0xff]
        %v423 = vld [vmem:[%s2] sm:$0xff]
        %v424 = vld [vmem:[%s2 + $0x8] sm:$0xff]
        %v425 = vld [vmem:[%s2 + $0x10] sm:$0xff]
        %v426 = vld [vmem:[%s2 + $0x18] sm:$0xff]
        %v427 = vld [vmem:[%s2 + $0x20] sm:$0xff]
        %v428 = vld [vmem:[%s2 + $0x28] sm:$0xff]
        %v429 = vld [vmem:[%s2 + $0x30] sm:$0xff]
        %v430 = vld [vmem:[%s2 + $0x38] sm:$0xff]
        %v431 = vld [vmem:[%s2 + $0x40] sm:$0xff]
        %v432 = vld [vmem:[%s2 + $0x48] sm:$0xff]
        %v433 = vld [vmem:[%s2 + $0x50] sm:$0xff]
        %v434 = vld [vmem:[%s2 + $0x58] sm:$0xff]
        %v435 = vld [vmem:[%s2 + $0x60] sm:$0xff]
        %v436 = vld [vmem:[%s2 + $0x68] sm:$0xff]
        %v437 = vld [vmem:[%s2 + $0x70] sm:$0xff]
        %v438 = vld [vmem:[%s2 + $0x78] sm:$0xff]
        %v439 = vld [vmem:[%s3] sm:$0x1]
        %v440 = vld [vmem:[%s4] sm:$0x1]
        %v441 = vadd.s32 %v439, 4294967294
        %vm442 = vcmp.ge.s32.totalorder %v441, 0
        %vm443 = vcmp.le.s32.totalorder %v441, 7
        %vm444 = vmand %vm442, %vm443
        %v445 = vadd.s32 %v440, 4294967294
        %vm446 = vcmp.ge.s32.totalorder %v445, 0
        %vm447 = vcmp.le.s32.totalorder %v445, 7
        %vm448 = vmand %vm446, %vm447
        %v449 = vadd.s32 %v439, 4294967295
        %vm450 = vcmp.ge.s32.totalorder %v449, 0
        %vm451 = vcmp.le.s32.totalorder %v449, 7
        %vm452 = vmand %vm450, %vm451
        %v453 = vadd.s32 %v440, 4294967295
        %vm454 = vcmp.ge.s32.totalorder %v453, 0
        %vm455 = vcmp.le.s32.totalorder %v453, 7
        %vm456 = vmand %vm454, %vm455
        %v457 = vadd.s32 %v439, 1
        %vm458 = vcmp.ge.s32.totalorder %v457, 0
        %vm459 = vcmp.le.s32.totalorder %v457, 7
        %vm460 = vmand %vm458, %vm459
        %v461 = vadd.s32 %v440, 1
        %vm462 = vcmp.ge.s32.totalorder %v461, 0
        %vm463 = vcmp.le.s32.totalorder %v461, 7
        %vm464 = vmand %vm462, %vm463
        %v465 = vadd.s32 %v439, 2
        %vm466 = vcmp.ge.s32.totalorder %v465, 0
        %vm467 = vcmp.le.s32.totalorder %v465, 7
        %vm468 = vmand %vm466, %vm467
        %v469 = vadd.s32 %v440, 2
        %vm470 = vcmp.ge.s32.totalorder %v469, 0
        %vm471 = vcmp.le.s32.totalorder %v469, 7
        %vm472 = vmand %vm470, %vm471
        %v473 = vld [vmem:[%s384] sm:$0xff]
        %475 = vst [vmem:[#allocation1] ss:$2 sm:$0xff] %v473
        %v476 = vld.sshfl [vmem:[#allocation1] sm:$0xff pattern:$0x75316420]
        %v477 = vld.sshfl [vmem:[#allocation1 + $0x8] sm:$0xff pattern:$0x75316420]
        %480 = vmatpush.msra.mxu0 %v406
        %481 = vmatpush.msra.mxu0 %v405
        %482 = vmatpush.msra.mxu0 %v404
        %483 = vmatpush.msra.mxu0 %v403
        %484 = vmatpush.msra.mxu0 %v402
        %485 = vmatpush.msra.mxu0 %v401
        %486 = vmatpush.msra.mxu0 %v400
        %487 = vmatpush.msra.mxu0 %v399
        %488 = vmatpush.msra.mxu0 %v398
        %489 = vmatpush.msra.mxu0 %v397
        %490 = vmatpush.msra.mxu0 %v396
        %491 = vmatpush.msra.mxu0 %v395
        %492 = vmatpush.msra.mxu0 %v394
        %493 = vmatpush.msra.mxu0 %v393
        %494 = vmatpush.msra.mxu0 %v392
        %495 = vmatpush.msra.mxu0 %v391
        %496 = vmatmul.f32.gmra.mxu0 %v476
        %v497 = vpop.f32.mrf.mxu0
        %v498 = vadd.f32 0.0, %v497
        %499 = vdwg.mxu0
        %500 = vmatpush.msra.mxu0 %v422
        %501 = vmatpush.msra.mxu0 %v421
        %502 = vmatpush.msra.mxu0 %v420
        %503 = vmatpush.msra.mxu0 %v419
        %504 = vmatpush.msra.mxu0 %v418
        %505 = vmatpush.msra.mxu0 %v417
        %506 = vmatpush.msra.mxu0 %v416
        %507 = vmatpush.msra.mxu0 %v415
        %508 = vmatpush.msra.mxu0 %v414
        %509 = vmatpush.msra.mxu0 %v413
        %510 = vmatpush.msra.mxu0 %v412
        %511 = vmatpush.msra.mxu0 %v411
        %512 = vmatpush.msra.mxu0 %v410
        %513 = vmatpush.msra.mxu0 %v409
        %514 = vmatpush.msra.mxu0 %v408
        %515 = vmatpush.msra.mxu0 %v407
        %516 = vmatmul.f32.gmra.mxu0 %v477
        %v517 = vpop.f32.mrf.mxu0
        %v518 = vadd.f32 %v498, %v517
        %519 = vdwg.mxu0
        %521 = vset.pattern.permute.xlu0 0
        %522 = vperm.xlu0 %521, %v385
        %v523 = vpop.permute.xlu0 %522
        %v525 = vperm.slane %v518, 0
        %v526 = vmul.f32 %v523, %v525
        %528 = vset.pattern.permute.xlu0 0
        %529 = vperm.xlu0 %528, %v386
        %v530 = vpop.permute.xlu0 %529
        %v532 = vadd.f32 %v530, %v526
        %533 = vset.pattern.permute.xlu0 1
        %534 = vperm.xlu0 %533, %v385
        %v535 = vpop.permute.xlu0 %534
        %v537 = vperm.slane %v518, 1
        %v538 = vmul.f32 %v535, %v537
        %v539 = vadd.f32 %v532, %v538
        %540 = vset.pattern.permute.xlu0 2
        %541 = vperm.xlu0 %540, %v385
        %v542 = vpop.permute.xlu0 %541
        %v544 = vperm.slane %v518, 2
        %v545 = vmul.f32 %v542, %v544
        %v546 = vadd.f32 %v539, %v545
        %547 = vset.pattern.permute.xlu0 3
        %548 = vperm.xlu0 %547, %v385
        %v549 = vpop.permute.xlu0 %548
        %v551 = vperm.slane %v518, 3
        %v552 = vmul.f32 %v549, %v551
        %v553 = vadd.f32 %v546, %v552
        %555 = vset.pattern.permute.xlu0 2
        %556 = vperm.xlu0 %555, %v387
        %v557 = vpop.permute.xlu0 %556
        %v559 = vmul.f32 %v557, %v553
        %vm560 = vcmask 1048064
        %561 = vrot.lane.b32.xlu0 %v553, 64
        %v562 = vpop.permute.xlu0 %561
        %v563 = vsel %vm560, %v562, %v553
        %564 = vrot.lane.b32.xlu0 %v563, 64
        %v565 = vpop.permute.xlu0 %564
        %v566 = vsel %vm560, %v565, %v553
        %v567 = vsel %vm444, 1, 0
        %v568 = vperm.slane %v567, 0
        %vm569 = vcmp.eq.s32.totalorder %v568, 1
        %571 = vrot.lane.b32.xlu0 %v566, 66
        %v572 = vpop.permute.xlu0 %571
        %v574 = vsel %vm569, %v572, 0.0
        %575 = vset.pattern.permute.xlu0 0
        %576 = vperm.xlu0 %575, %v387
        %v577 = vpop.permute.xlu0 %576
        %v579 = vmul.f32 %v577, %v574
        %v580 = vadd.f32 %v559, %v579
        %v581 = vsel %vm452, 1, 0
        %v582 = vperm.slane %v581, 0
        %vm583 = vcmp.eq.s32.totalorder %v582, 1
        %584 = vrot.lane.b32.xlu0 %v566, 65
        %v585 = vpop.permute.xlu0 %584
        %v587 = vsel %vm583, %v585, 0.0
        %588 = vset.pattern.permute.xlu0 1
        %589 = vperm.xlu0 %588, %v387
        %v590 = vpop.permute.xlu0 %589
        %v592 = vmul.f32 %v590, %v587
        %v593 = vadd.f32 %v580, %v592
        %v594 = vsel %vm460, 1, 0
        %v595 = vperm.slane %v594, 0
        %vm596 = vcmp.eq.s32.totalorder %v595, 1
        %597 = vrot.lane.b32.xlu0 %v566, 127
        %v598 = vpop.permute.xlu0 %597
        %v600 = vsel %vm596, %v598, 0.0
        %601 = vset.pattern.permute.xlu0 3
        %602 = vperm.xlu0 %601, %v387
        %v603 = vpop.permute.xlu0 %602
        %v605 = vmul.f32 %v603, %v600
        %v606 = vadd.f32 %v593, %v605
        %v607 = vsel %vm468, 1, 0
        %v608 = vperm.slane %v607, 0
        %vm609 = vcmp.eq.s32.totalorder %v608, 1
        %610 = vrot.lane.b32.xlu0 %v566, 126
        %v611 = vpop.permute.xlu0 %610
        %v613 = vsel %vm609, %v611, 0.0
        %614 = vset.pattern.permute.xlu0 4
        %615 = vperm.xlu0 %614, %v387
        %v616 = vpop.permute.xlu0 %615
        %v618 = vmul.f32 %v616, %v613
        %v619 = vadd.f32 %v606, %v618
        %621 = vset.pattern.permute.xlu0 0
        %622 = vperm.xlu0 %621, %v388
        %v623 = vpop.permute.xlu0 %622
        %v625 = vadd.f32 %v619, %v623
        %627 = vset.pattern.permute.xlu0 2
        %628 = vperm.xlu0 %627, %v389
        %v629 = vpop.permute.xlu0 %628
        %v631 = vmul.f32 %v629, %v625
        %632 = vrot.lane.b32.xlu0 %v625, 64
        %v633 = vpop.permute.xlu0 %632
        %v634 = vsel %vm560, %v633, %v625
        %635 = vrot.lane.b32.xlu0 %v634, 64
        %v636 = vpop.permute.xlu0 %635
        %v637 = vsel %vm560, %v636, %v625
        %v638 = vsel %vm448, 1, 0
        %v639 = vperm.slane %v638, 0
        %vm640 = vcmp.eq.s32.totalorder %v639, 1
        %642 = vrot.lane.b32.xlu0 %v637, 80
        %v643 = vpop.permute.xlu0 %642
        %v645 = vsel %vm640, %v643, 0.0
        %646 = vset.pattern.permute.xlu0 0
        %647 = vperm.xlu0 %646, %v389
        %v648 = vpop.permute.xlu0 %647
        %v650 = vmul.f32 %v648, %v645
        %v651 = vadd.f32 %v631, %v650
        %v652 = vsel %vm456, 1, 0
        %v653 = vperm.slane %v652, 0
        %vm654 = vcmp.eq.s32.totalorder %v653, 1
        %655 = vrot.lane.b32.xlu0 %v637, 72
        %v656 = vpop.permute.xlu0 %655
        %v658 = vsel %vm654, %v656, 0.0
        %659 = vset.pattern.permute.xlu0 1
        %660 = vperm.xlu0 %659, %v389
        %v661 = vpop.permute.xlu0 %660
        %v663 = vmul.f32 %v661, %v658
        %v664 = vadd.f32 %v651, %v663
        %v665 = vsel %vm464, 1, 0
        %v666 = vperm.slane %v665, 0
        %vm667 = vcmp.eq.s32.totalorder %v666, 1
        %668 = vrot.lane.b32.xlu0 %v637, 120
        %v669 = vpop.permute.xlu0 %668
        %v671 = vsel %vm667, %v669, 0.0
        %672 = vset.pattern.permute.xlu0 3
        %673 = vperm.xlu0 %672, %v389
        %v674 = vpop.permute.xlu0 %673
        %v676 = vmul.f32 %v674, %v671
        %v677 = vadd.f32 %v664, %v676
        %v678 = vsel %vm472, 1, 0
        %v679 = vperm.slane %v678, 0
        %vm680 = vcmp.eq.s32.totalorder %v679, 1
        %681 = vrot.lane.b32.xlu0 %v637, 112
        %v682 = vpop.permute.xlu0 %681
        %v684 = vsel %vm680, %v682, 0.0
        %685 = vset.pattern.permute.xlu0 4
        %686 = vperm.xlu0 %685, %v389
        %v687 = vpop.permute.xlu0 %686
        %v689 = vmul.f32 %v687, %v684
        %v690 = vadd.f32 %v677, %v689
        %692 = vset.pattern.permute.xlu0 0
        %693 = vperm.xlu0 %692, %v390
        %v694 = vpop.permute.xlu0 %693
        %v696 = vadd.f32 %v690, %v694
        %v697 = vmul.f32 %v696, 0.5
        %v698 = vtanh.pop %v697
        %v699 = vadd.f32 %v698, 1.0
        %v700 = vmul.f32 %v699, 0.5
        %vm701 = vcmask 523264
        %v703 = vsel %vm701, %v700, 0
        %705 = vmatpush.msra.mxu0 0.0
        %706 = vmatpush.msra.mxu0 0.0
        %707 = vmatpush.msra.mxu0 0.0
        %708 = vmatpush.msra.mxu0 0.0
        %709 = vmatpush.msra.mxu0 0.0
        %710 = vmatpush.msra.mxu0 0.0
        %711 = vmatpush.msra.mxu0 0.0
        %712 = vmatpush.msra.mxu0 0.0
        %713 = vmatpush.msra.mxu0 %v437
        %714 = vmatpush.msra.mxu0 %v435
        %715 = vmatpush.msra.mxu0 %v433
        %716 = vmatpush.msra.mxu0 %v431
        %717 = vmatpush.msra.mxu0 %v429
        %718 = vmatpush.msra.mxu0 %v427
        %719 = vmatpush.msra.mxu0 %v425
        %720 = vmatpush.msra.mxu0 %v423
        %721 = vmatmul.f32.gmra.mxu0 %v703
        %v722 = vpop.f32.mrf.mxu0
        %v723 = vadd.f32 0.0, %v722
        %724 = vdwg.mxu0
        %725 = vmatpush.msra.mxu0 0.0
        %726 = vmatpush.msra.mxu0 0.0
        %727 = vmatpush.msra.mxu0 0.0
        %728 = vmatpush.msra.mxu0 0.0
        %729 = vmatpush.msra.mxu0 0.0
        %730 = vmatpush.msra.mxu0 0.0
        %731 = vmatpush.msra.mxu0 0.0
        %732 = vmatpush.msra.mxu0 0.0
        %733 = vmatpush.msra.mxu0 %v438
        %734 = vmatpush.msra.mxu0 %v436
        %735 = vmatpush.msra.mxu0 %v434
        %736 = vmatpush.msra.mxu0 %v432
        %737 = vmatpush.msra.mxu0 %v430
        %738 = vmatpush.msra.mxu0 %v428
        %739 = vmatpush.msra.mxu0 %v426
        %740 = vmatpush.msra.mxu0 %v424
        %741 = vmatmul.f32.gmra.mxu0 %v703
        %v742 = vpop.f32.mrf.mxu0
        %v743 = vadd.f32 0.0, %v742
        %744 = vdwg.mxu0
        %v747 = vrot.slane %v743, 4
        %vm748 = vcmask 1043456
        %v749 = vsel %vm748, %v723, %v747
        %v751 = vmul.f32 %v473, %v749
        %752 = vst [vmem:[%s379] sm:$0xff] %v751
        %s753 = sand.u32 %s269, 1
        %s754 = scalar_lea.sflag [#allocation3], %s753
        %s755 = sand.u32 %s269, 1
        %s756 = smul.addr %s755, 8
        %s757 = scalar_lea.vmem [#allocation2], %s756
        // Predicated region
        $region65: #{tpu_custom_call.1} parent=63 // pred_check
          %p758 = pneg %p279
        $region66: #{tpu_custom_call.1} parent=63 // pred_check_branch
          %760 = sbr.rel (%p758) target = $region68
        $region67: #{tpu_custom_call.1} parent=63 // pred_region
          %762 = vsyncadd %s754, 0
          %s763 = smul.addr %s25, 2
          %s764 = smul.addr %s763, 4
          %s765 = scalar_lea.hbm %s11, %s764
          %s767 = sshll.u32 %s757, 4
          %s768 = int_to_ptr.vmem [resolvable:$true] %s767
          %s769 = sshll.u32 %s765, 4
          %s770 = int_to_ptr.hbm [resolvable:$true] %s769
          %772 = dma.vmem_to_hbm [thread:$0]  %s768, 128, %s770, %s754
        $region68: #{tpu_custom_call.1} parent=63 // pred_fallthru
          _
      $region64: #{tpu_custom_call.1} parent=5 // pred_fallthru
        _
      %p773 = scmp.le.s32.totalorder 2, %s20
      // Predicated region
      $region69: #{tpu_custom_call.1} parent=5 // pred_check
        %p774 = pneg %p773
      $region70: #{tpu_custom_call.1} parent=5 // pred_check_branch
        %776 = sbr.rel (%p774) target = $region72
      $region71: #{tpu_custom_call.1} parent=5 // pred_region
        %s777 = ssub.s32 %s20, 2
        // Predicated region
        $region73: #{tpu_custom_call.1} parent=71 // pred_check
          %p778 = pneg %p285
        $region74: #{tpu_custom_call.1} parent=71 // pred_check_branch
          %780 = sbr.rel (%p778) target = $region76
        $region75: #{tpu_custom_call.1} parent=71 // pred_region
          %s781 = sand.u32 %s270, 1
          %s782 = scalar_lea.sflag [#allocation3], %s781
          %s783 = sand.u32 %s270, 1
          %s784 = smul.addr %s783, 8
          %s785 = scalar_lea.vmem [#allocation2], %s784
          %787 = dma.done %s782, 128
        $region76: #{tpu_custom_call.1} parent=71 // pred_fallthru
          _
      $region72: #{tpu_custom_call.1} parent=5 // pred_fallthru
        _
    $region6: #{tpu_custom_call.1} parent=1 // loop_footer
      %s24 = sadd.s32 1, %s20
    $region7: #{tpu_custom_call.1} parent=1 // loop_footer_branch
      %19 = sbr.rel target = $region3
    $region8: #{tpu_custom_call.1} parent=1 // loop_exit
      _
    %788 = vsyncpa [#allocation3], 1
    %s789 = scalar_lea.sflag [#allocation3], 1
    %790 = vsyncpa %s789, 1

</llo_original>
